<compile_context>
chip_gen: v6e
topology: v6e:2x2x1
jax: 0.10.0
libtpu: 0.0.40
codegen_flags: <defaults>
</compile_context>

<pallas_src>
import jax
import jax.numpy as jnp
from jax.experimental import pallas as pl
from jax.experimental.pallas import tpu as pltpu

SUBLANE = 8                    # f32 sublane granularity (second-to-last dim)
_SPLIT_THRESHOLD_ROWS = 2048   # force >=2 grid steps above this batch (v7x dual-TC)


def _round_up(x, m):
    return (x + m - 1) // m * m


def actor_kernel(obs_ref, *refs):
    """MLP trunk ([Linear -> ReLU]*L -> Linear) + log_softmax on one batch tile."""
    out_ref = refs[-1]
    param_refs = refs[:-1]
    n_layers = len(param_refs) // 2

    h = obs_ref[...]
    for layer in range(n_layers):
        w_ref = param_refs[2 * layer]
        b_ref = param_refs[2 * layer + 1]
        # MXU matmul: operands in the (possibly reduced-precision) weight
        # dtype; accumulation, bias add and ReLU stay in f32.
        h = jnp.dot(h.astype(w_ref.dtype), w_ref[...],
                    preferred_element_type=jnp.float32) + b_ref[...]
        if layer < n_layers - 1:
            h = jnp.maximum(h, 0.0)

    # GumbelSoftmax / RelaxedOneHotCategorical logits normalization:
    # dist.logits == log_softmax(raw_logits, -1), numerically stable.
    m = jnp.max(h, axis=-1, keepdims=True)
    z = h - m
    lse = jnp.log(jnp.sum(jnp.exp(z), axis=-1, keepdims=True))
    out_ref[...] = (z - lse).astype(out_ref.dtype)


def soft_discrete_actor_forward(obs, params, *, block_b=4096,
                                matmul_dtype=jnp.bfloat16):
    """Returns the normalized logits of the GumbelSoftmax distribution.

    matmul_dtype=jnp.bfloat16 (default) feeds the MXU bf16 operands with f32
    accumulation; pass jnp.float32 for exact PyTorch-f32-trunk numerics.
    """
    obs = jnp.asarray(obs)
    B, obs_dim = obs.shape
    A = params[-1][0].shape[1]

    # Cast params once (tiny, VMEM-resident); biases normalized to (1, dout) f32
    # so PyTorch-style (dout,) biases also work.
    flat_params = []
    for w, b in params:
        flat_params.append(jnp.asarray(w).astype(matmul_dtype))
        flat_params.append(jnp.asarray(b).reshape(1, -1).astype(jnp.float32))

    # Batch padded only to a sublane multiple (<= 7 extra rows), never to TB.
    Bp = _round_up(B, SUBLANE)
    if Bp != B:
        obs = jnp.pad(obs, ((0, Bp - B), (0, 0)))

    # Batch tile: split the batch evenly into ~block_b-row tiles; force at
    # least 2 grid steps on large batches so v7x's two TensorCores both get work.
    n_blocks = pl.cdiv(Bp, max(block_b, SUBLANE))
    if n_blocks < 2 and Bp >= _SPLIT_THRESHOLD_ROWS:
        n_blocks = 2
    TB = _round_up(pl.cdiv(Bp, n_blocks), SUBLANE)
    grid = (pl.cdiv(Bp, TB),)

    # obs: batch-streamed; weights/biases: constant index_map -> DMA'd once.
    in_specs = [pl.BlockSpec((TB, obs_dim), lambda i: (i, 0))]
    for p in flat_params:
        in_specs.append(pl.BlockSpec(p.shape, lambda i: (0, 0)))
    out_spec = pl.BlockSpec((TB, A), lambda i: (i, 0))   # true-A-width writeback

    # Advisory cost for the XLA scheduler.
    dims = [obs_dim] + [w.shape[1] for w, _ in params]
    flops = 2 * Bp * sum(d0 * d1 for d0, d1 in zip(dims[:-1], dims[1:]))
    param_bytes = sum(int(p.size) * p.dtype.itemsize for p in flat_params)
    bytes_accessed = int(obs.size) * obs.dtype.itemsize + param_bytes + Bp * A * 4
    cost = pl.CostEstimate(flops=flops, transcendentals=Bp * A,
                           bytes_accessed=bytes_accessed)

    # VMEM budget: double-buffered obs/out streams + resident params + f32
    # intermediates + headroom; floor 32 MiB, cap 48 MiB (portable to v7x's 64 MiB).
    stream_bytes = TB * obs_dim * obs.dtype.itemsize + TB * A * 4
    inter_bytes = TB * sum(dims[1:]) * 4
    vmem_need = 2 * stream_bytes + param_bytes + inter_bytes + (4 << 20)
    vmem_limit = int(min(max(vmem_need, 32 << 20), 48 << 20))

    out = pl.pallas_call(
        actor_kernel,
        out_shape=jax.ShapeDtypeStruct((Bp, A), jnp.float32),
        grid=grid,
        in_specs=in_specs,
        out_specs=out_spec,
        compiler_params=pltpu.CompilerParams(
            dimension_semantics=("parallel",),
            vmem_limit_bytes=vmem_limit),
        cost_estimate=cost,
    )(obs, *flat_params)

    return out if Bp == B else out[:B]


def init_params(key, obs_dim, hidden_dims, action_dim):
    """Deterministic synthetic init (stand-in for weight_init / orthogonal)."""
    dims = [obs_dim] + list(hidden_dims) + [action_dim]
    params = []
    for din, dout in zip(dims[:-1], dims[1:]):
        key, kw, kb = jax.random.split(key, 3)
        scale = 1.0 / jnp.sqrt(jnp.float32(din))
        w = jax.random.normal(kw, (din, dout), jnp.float32) * scale   # (in, out)
        b = jax.random.normal(kb, (dout,), jnp.float32) * 0.01        # PyTorch-style (dout,)
        params.append((w, b))
    return params


def reference_forward(obs, params, matmul_dtype=jnp.bfloat16):
    """Pure-JAX reference with the same operand-dtype / f32-accumulate matmuls."""
    h = obs
    n = len(params)
    for i, (w, b) in enumerate(params):
        b = jnp.asarray(b).reshape(1, -1).astype(jnp.float32)
        h = jnp.dot(h.astype(matmul_dtype), w.astype(matmul_dtype),
                    preferred_element_type=jnp.float32) + b
        if i < n - 1:
            h = jnp.maximum(h, 0.0)
    return jax.nn.log_softmax(h, axis=-1)


if __name__ == "__main__":
    B, obs_dim, hidden_dims, action_dim = 32, 32, (64, 64), 16
    temperature = 0.5  # TODO(synk): temperature only parameterizes GumbelSoftmax sampling (rsample/sample), not the forward logits.

    key = jax.random.PRNGKey(0)
    key, kobs = jax.random.split(key)
    obs = jax.random.normal(kobs, (B, obs_dim), jnp.float32)
    params = init_params(key, obs_dim, hidden_dims, action_dim)

    # Small batch tile (8 rows) to exercise the multi-step, pipelined grid.
    out = soft_discrete_actor_forward(obs, params, block_b=8)
    out = jax.block_until_ready(out)

    ref = reference_forward(obs, params)
    assert out.shape == (B, action_dim)
    assert jnp.allclose(out, ref, atol=1e-4, rtol=1e-4), \
        float(jnp.max(jnp.abs(out - ref)))
    # normalized logits must be valid log-probs (logsumexp == 0)
    assert jnp.allclose(jax.nn.logsumexp(out, axis=-1), 0.0, atol=1e-4)

    print("KERNEL_OK")
</pallas_src>

<mosaic_0001>
module attributes {stable_mosaic.version = 11 : i64} {
  func.func @actor_kernel(%arg0: i32, %arg1: memref<8x32xf32, #tpu.memory_space<vmem>>, %arg2: memref<32x64xbf16, #tpu.memory_space<vmem>>, %arg3: memref<1x64xf32, #tpu.memory_space<vmem>>, %arg4: memref<64x64xbf16, #tpu.memory_space<vmem>>, %arg5: memref<1x64xf32, #tpu.memory_space<vmem>>, %arg6: memref<64x16xbf16, #tpu.memory_space<vmem>>, %arg7: memref<1x16xf32, #tpu.memory_space<vmem>>, %arg8: memref<8x16xf32, #tpu.memory_space<vmem>>) attributes {dimension_semantics = [#tpu.dimension_semantics<parallel>], iteration_bounds = array<i64: 4>, scalar_prefetch = 0 : i64, scratch_operands = 0 : i64, tpu.core_type = #tpu.core_type<tc>, window_params = [{transform_indices = @transform_0, window_bounds = array<i64: 8, 32>}, {pipeline_mode = #tpu.pipeline_mode<synchronous>, transform_indices = @transform_1, window_bounds = array<i64: 32, 64>}, {pipeline_mode = #tpu.pipeline_mode<synchronous>, transform_indices = @transform_2, window_bounds = array<i64: 1, 64>}, {pipeline_mode = #tpu.pipeline_mode<synchronous>, transform_indices = @transform_3, window_bounds = array<i64: 64, 64>}, {pipeline_mode = #tpu.pipeline_mode<synchronous>, transform_indices = @transform_4, window_bounds = array<i64: 1, 64>}, {pipeline_mode = #tpu.pipeline_mode<synchronous>, transform_indices = @transform_5, window_bounds = array<i64: 64, 16>}, {pipeline_mode = #tpu.pipeline_mode<synchronous>, transform_indices = @transform_6, window_bounds = array<i64: 1, 16>}, {transform_indices = @transform_7, window_bounds = array<i64: 8, 16>}]} {
    %c0 = arith.constant 0 : index
    %c0_0 = arith.constant 0 : index
    %0 = vector.load %arg1[%c0, %c0_0] : memref<8x32xf32, #tpu.memory_space<vmem>>, vector<8x32xf32>
    %1 = arith.truncf %0 : vector<8x32xf32> to vector<8x32xbf16>
    %c0_1 = arith.constant 0 : index
    %c0_2 = arith.constant 0 : index
    %2 = vector.load %arg2[%c0_1, %c0_2] : memref<32x64xbf16, #tpu.memory_space<vmem>>, vector<32x64xbf16>
    %cst = arith.constant dense<0.000000e+00> : vector<8x64xf32>
    %3 = tpu.matmul %1, %2, %cst {dimension_numbers = #tpu.dot_dimension_numbers<[1], [0], [0], [1], [0, 0, 1, 1], [], []>} : vector<8x32xbf16>, vector<32x64xbf16>, vector<8x64xf32> -> vector<8x64xf32>
    %c0_3 = arith.constant 0 : index
    %c0_4 = arith.constant 0 : index
    %4 = vector.load %arg3[%c0_3, %c0_4] : memref<1x64xf32, #tpu.memory_space<vmem>>, vector<1x64xf32>
    %5 = vector.broadcast %4 : vector<1x64xf32> to vector<8x64xf32>
    %6 = arith.addf %3, %5 : vector<8x64xf32>
    %cst_5 = arith.constant 0.000000e+00 : f32
    %7 = vector.broadcast %cst_5 : f32 to vector<8x64xf32>
    %8 = arith.maximumf %6, %7 : vector<8x64xf32>
    %9 = arith.truncf %8 : vector<8x64xf32> to vector<8x64xbf16>
    %c0_6 = arith.constant 0 : index
    %c0_7 = arith.constant 0 : index
    %10 = vector.load %arg4[%c0_6, %c0_7] : memref<64x64xbf16, #tpu.memory_space<vmem>>, vector<64x64xbf16>
    %cst_8 = arith.constant dense<0.000000e+00> : vector<8x64xf32>
    %11 = tpu.matmul %9, %10, %cst_8 {dimension_numbers = #tpu.dot_dimension_numbers<[1], [0], [0], [1], [0, 0, 1, 1], [], []>} : vector<8x64xbf16>, vector<64x64xbf16>, vector<8x64xf32> -> vector<8x64xf32>
    %c0_9 = arith.constant 0 : index
    %c0_10 = arith.constant 0 : index
    %12 = vector.load %arg5[%c0_9, %c0_10] : memref<1x64xf32, #tpu.memory_space<vmem>>, vector<1x64xf32>
    %13 = vector.broadcast %12 : vector<1x64xf32> to vector<8x64xf32>
    %14 = arith.addf %11, %13 : vector<8x64xf32>
    %cst_11 = arith.constant 0.000000e+00 : f32
    %15 = vector.broadcast %cst_11 : f32 to vector<8x64xf32>
    %16 = arith.maximumf %14, %15 : vector<8x64xf32>
    %17 = arith.truncf %16 : vector<8x64xf32> to vector<8x64xbf16>
    %c0_12 = arith.constant 0 : index
    %c0_13 = arith.constant 0 : index
    %18 = vector.load %arg6[%c0_12, %c0_13] : memref<64x16xbf16, #tpu.memory_space<vmem>>, vector<64x16xbf16>
    %cst_14 = arith.constant dense<0.000000e+00> : vector<8x16xf32>
    %19 = tpu.matmul %17, %18, %cst_14 {dimension_numbers = #tpu.dot_dimension_numbers<[1], [0], [0], [1], [0, 0, 1, 1], [], []>} : vector<8x64xbf16>, vector<64x16xbf16>, vector<8x16xf32> -> vector<8x16xf32>
    %c0_15 = arith.constant 0 : index
    %c0_16 = arith.constant 0 : index
    %20 = vector.load %arg7[%c0_15, %c0_16] : memref<1x16xf32, #tpu.memory_space<vmem>>, vector<1x16xf32>
    %21 = vector.broadcast %20 : vector<1x16xf32> to vector<8x16xf32>
    %22 = arith.addf %19, %21 : vector<8x16xf32>
    %cst_17 = arith.constant dense<0xFF800000> : vector<8xf32>
    %23 = vector.multi_reduction <maximumf>, %22, %cst_17 [1] : vector<8x16xf32> to vector<8xf32>
    %24 = vector.shape_cast %23 : vector<8xf32> to vector<8x1xf32>
    %25 = vector.broadcast %24 : vector<8x1xf32> to vector<8x16xf32>
    %26 = arith.subf %22, %25 : vector<8x16xf32>
    %27 = math.exp %26 : vector<8x16xf32>
    %cst_18 = arith.constant dense<0.000000e+00> : vector<8xf32>
    %28 = vector.multi_reduction <add>, %27, %cst_18 [1] : vector<8x16xf32> to vector<8xf32>
    %29 = vector.shape_cast %28 : vector<8xf32> to vector<8x1xf32>
    %30 = math.log %29 : vector<8x1xf32>
    %31 = vector.broadcast %30 : vector<8x1xf32> to vector<8x16xf32>
    %32 = arith.subf %26, %31 : vector<8x16xf32>
    %c0_19 = arith.constant 0 : index
    %c0_20 = arith.constant 0 : index
    %33 = vector.load %arg8[%c0_19, %c0_20] : memref<8x16xf32, #tpu.memory_space<vmem>>, vector<8x16xf32>
    tpu.vector_store %arg8[%c0_19, %c0_20], %32 {strides = array<i32>} : memref<8x16xf32, #tpu.memory_space<vmem>>, vector<8x16xf32>,
    return
  }
  func.func @transform_0(%arg0: i32) -> (i32, i32) {
    %c0_i32 = arith.constant 0 : i32
    %c0_i32_0 = arith.constant 0 : i32
    return %arg0, %c0_i32 : i32, i32
  }
  func.func @transform_1(%arg0: i32) -> (i32, i32) {
    %c0_i32 = arith.constant 0 : i32
    %c0_i32_0 = arith.constant 0 : i32
    %c0_i32_1 = arith.constant 0 : i32
    return %c0_i32, %c0_i32_0 : i32, i32
  }
  func.func @transform_2(%arg0: i32) -> (i32, i32) {
    %c0_i32 = arith.constant 0 : i32
    %c0_i32_0 = arith.constant 0 : i32
    %c0_i32_1 = arith.constant 0 : i32
    return %c0_i32, %c0_i32_0 : i32, i32
  }
  func.func @transform_3(%arg0: i32) -> (i32, i32) {
    %c0_i32 = arith.constant 0 : i32
    %c0_i32_0 = arith.constant 0 : i32
    %c0_i32_1 = arith.constant 0 : i32
    return %c0_i32, %c0_i32_0 : i32, i32
  }
  func.func @transform_4(%arg0: i32) -> (i32, i32) {
    %c0_i32 = arith.constant 0 : i32
    %c0_i32_0 = arith.constant 0 : i32
    %c0_i32_1 = arith.constant 0 : i32
    return %c0_i32, %c0_i32_0 : i32, i32
  }
  func.func @transform_5(%arg0: i32) -> (i32, i32) {
    %c0_i32 = arith.constant 0 : i32
    %c0_i32_0 = arith.constant 0 : i32
    %c0_i32_1 = arith.constant 0 : i32
    return %c0_i32, %c0_i32_0 : i32, i32
  }
  func.func @transform_6(%arg0: i32) -> (i32, i32) {
    %c0_i32 = arith.constant 0 : i32
    %c0_i32_0 = arith.constant 0 : i32
    %c0_i32_1 = arith.constant 0 : i32
    return %c0_i32, %c0_i32_0 : i32, i32
  }
  func.func @transform_7(%arg0: i32) -> (i32, i32) {
    %c0_i32 = arith.constant 0 : i32
    %c0_i32_0 = arith.constant 0 : i32
    return %arg0, %c0_i32 : i32, i32
  }
}

</mosaic_0001>

<llo_original>
// kernel: tpu_custom_call.1
$region0: #{tpu_custom_call.1}
  #allocation0 [shape = 'u32[]', space=smem, size = 0x4, offset = 0x4, fixed_abs, tag = 'smem constant byte address 0x4 - core index']
  #allocation1 [shape = 'u32[144,128]{1,0:T(1,128)}', space=vmem, size = 0x12000, scoped, tag = 'internal scratch']
  %s0 = inlined_call_operand.vmem [shape: f32[32,32], index: 0, kind: input, shape index: {}]
  %s1 = inlined_call_operand.hbm [shape: bf16[32,64], index: 1, kind: input, shape index: {}]
  %s2 = inlined_call_operand.vmem [shape: f32[1,64], index: 2, kind: input, shape index: {}]
  %s3 = inlined_call_operand.hbm [shape: bf16[64,64], index: 3, kind: input, shape index: {}]
  %s4 = inlined_call_operand.vmem [shape: f32[1,64], index: 4, kind: input, shape index: {}]
  %s5 = inlined_call_operand.vmem [shape: bf16[64,16], index: 5, kind: input, shape index: {}]
  %s6 = inlined_call_operand.vmem [shape: f32[1,16], index: 6, kind: input, shape index: {}]
  %s7 = inlined_call_operand.vmem [shape: f32[32,16], index: 7, kind: output, shape index: {}]
  %s8 = sld [smem:[#allocation0]]
  $region69: #{tpu_custom_call.1} parent=0
    _
  %s10 = ssub.s32 1, %s8
  %s11 = scalar_select 0, %s10, %s8
  $region1: #{tpu_custom_call.1} parent=0
    #allocation2 [shape = 'u8[8192]{0}', space=vmem, size = 0x2000, scoped, tag = 'input window, operand 1, single buffered']
    #allocation3 [shape = 's32[2]{0}', space=sflag, size = 0x8, scoped, tag = 'scoped memory for tpu_custom_call.1']
    #allocation4 [shape = 'u8[16384]{0}', space=vmem, size = 0x4000, scoped, tag = 'input window, operand 3, single buffered']
    #allocation5 [shape = 's32[1]{0}', space=sflag, size = 0x4, scoped, tag = 'scoped memory for tpu_custom_call.1']
    %12 = vsyncpa [#allocation3], 0
    %13 = vsyncpa [#allocation5], 0
    loop: start=0, step=1, limit=6
    $region2: #{tpu_custom_call.1} parent=1 // loop_pre_header
      _
    $region3: #{tpu_custom_call.1} parent=1 // loop_header
      %s15 = sphi 0, %s19
      %p16 = scmp.ge.s32.totalorder %s15, 6
      %s25 = sphi 0, %s27
      %s28 = sphi 0, %s25
      %s29 = sphi 0, %s28
      %s45 = sphi 0, %s29
      %s49 = sphi 0, %s49
      %s51 = sphi 0, %s49
      %s52 = sphi 0, %s51
      %s66 = sphi 0, %s52
      %s70 = sphi 0, %s70
      %s72 = sphi 0, %s70
      %s73 = sphi 0, %s72
      %s87 = sphi 0, %s73
      %s91 = sphi 0, %s91
      %s93 = sphi 0, %s91
      %s94 = sphi 0, %s93
      %s108 = sphi 0, %s94
      %s112 = sphi 0, %s112
      %s114 = sphi 0, %s112
      %s115 = sphi 0, %s114
      %s129 = sphi 0, %s115
      %s133 = sphi 0, %s133
      %s135 = sphi 0, %s133
      %s136 = sphi 0, %s135
      %s150 = sphi 0, %s136
      %s154 = sphi 0, %s154
      %s156 = sphi 0, %s154
      %s157 = sphi 0, %s156
      %s171 = sphi 0, %s157
      %s177 = sphi 0, %s179
      %s180 = sphi 0, %s177
      %s181 = sphi 0, %s180
      %s197 = sphi 0, %s181
    $region4: #{tpu_custom_call.1} parent=1 // loop_header_branch
      %18 = sbr.rel (%p16) target = $region8
    $region5: #{tpu_custom_call.1} parent=1 // loop_body
      %s20 = ssub.s32 %s15, 1
      %s21 = ssub.s32 %s15, 2
      %s22 = sadd.s32 %s15, 1
      %s23 = ssub.s32 %s15, %s22
      %p24 = scmp.eq.s32.totalorder %s23, 0
      %s26 = sadd.s32 %s25, 1
      %s27 = scalar_select %p24, %s25, %s26
      %p30 = pneg %p24
      %p31 = scmp.eq.s32.totalorder %s15, 3
      %p32 = por %p30, %p31
      %p33 = scmp.ne.s32.totalorder %s25, %s28
      %p34 = scmp.eq.s32.totalorder %s15, 0
      %p35 = por %p33, %p34
      %p36 = scmp.ne.s32.totalorder %s25, %s28
      %p37 = scmp.eq.s32.totalorder %s20, 3
      %p38 = por %p36, %p37
      %p39 = scmp.ne.s32.totalorder %s28, %s29
      %p40 = scmp.eq.s32.totalorder %s20, 0
      %p41 = por %p39, %p40
      %p42 = scmp.ne.s32.totalorder %s28, %s29
      %p43 = scmp.eq.s32.totalorder %s21, 3
      %p44 = por %p42, %p43
      %p46 = scmp.ne.s32.totalorder %s29, %s45
      %p47 = scmp.eq.s32.totalorder %s21, 0
      %p48 = por %p46, %p47
      %s50 = sadd.s32 %s49, 1
      %p53 = scmp.eq.s32.totalorder %s15, 3
      %p54 = scmp.ne.s32.totalorder %s49, %s51
      %p55 = scmp.eq.s32.totalorder %s15, 0
      %p56 = por %p54, %p55
      %p57 = scmp.ne.s32.totalorder %s49, %s51
      %p58 = scmp.eq.s32.totalorder %s20, 3
      %p59 = por %p57, %p58
      %p60 = scmp.ne.s32.totalorder %s51, %s52
      %p61 = scmp.eq.s32.totalorder %s20, 0
      %p62 = por %p60, %p61
      %p63 = scmp.ne.s32.totalorder %s51, %s52
      %p64 = scmp.eq.s32.totalorder %s21, 3
      %p65 = por %p63, %p64
      %p67 = scmp.ne.s32.totalorder %s52, %s66
      %p68 = scmp.eq.s32.totalorder %s21, 0
      %p69 = por %p67, %p68
      %s71 = sadd.s32 %s70, 1
      %p74 = scmp.eq.s32.totalorder %s15, 3
      %p75 = scmp.ne.s32.totalorder %s70, %s72
      %p76 = scmp.eq.s32.totalorder %s15, 0
      %p77 = por %p75, %p76
      %p78 = scmp.ne.s32.totalorder %s70, %s72
      %p79 = scmp.eq.s32.totalorder %s20, 3
      %p80 = por %p78, %p79
      %p81 = scmp.ne.s32.totalorder %s72, %s73
      %p82 = scmp.eq.s32.totalorder %s20, 0
      %p83 = por %p81, %p82
      %p84 = scmp.ne.s32.totalorder %s72, %s73
      %p85 = scmp.eq.s32.totalorder %s21, 3
      %p86 = por %p84, %p85
      %p88 = scmp.ne.s32.totalorder %s73, %s87
      %p89 = scmp.eq.s32.totalorder %s21, 0
      %p90 = por %p88, %p89
      %s92 = sadd.s32 %s91, 1
      %p95 = scmp.eq.s32.totalorder %s15, 3
      %p96 = scmp.ne.s32.totalorder %s91, %s93
      %p97 = scmp.eq.s32.totalorder %s15, 0
      %p98 = por %p96, %p97
      %p99 = scmp.ne.s32.totalorder %s91, %s93
      %p100 = scmp.eq.s32.totalorder %s20, 3
      %p101 = por %p99, %p100
      %p102 = scmp.ne.s32.totalorder %s93, %s94
      %p103 = scmp.eq.s32.totalorder %s20, 0
      %p104 = por %p102, %p103
      %p105 = scmp.ne.s32.totalorder %s93, %s94
      %p106 = scmp.eq.s32.totalorder %s21, 3
      %p107 = por %p105, %p106
      %p109 = scmp.ne.s32.totalorder %s94, %s108
      %p110 = scmp.eq.s32.totalorder %s21, 0
      %p111 = por %p109, %p110
      %s113 = sadd.s32 %s112, 1
      %p116 = scmp.eq.s32.totalorder %s15, 3
      %p117 = scmp.ne.s32.totalorder %s112, %s114
      %p118 = scmp.eq.s32.totalorder %s15, 0
      %p119 = por %p117, %p118
      %p120 = scmp.ne.s32.totalorder %s112, %s114
      %p121 = scmp.eq.s32.totalorder %s20, 3
      %p122 = por %p120, %p121
      %p123 = scmp.ne.s32.totalorder %s114, %s115
      %p124 = scmp.eq.s32.totalorder %s20, 0
      %p125 = por %p123, %p124
      %p126 = scmp.ne.s32.totalorder %s114, %s115
      %p127 = scmp.eq.s32.totalorder %s21, 3
      %p128 = por %p126, %p127
      %p130 = scmp.ne.s32.totalorder %s115, %s129
      %p131 = scmp.eq.s32.totalorder %s21, 0
      %p132 = por %p130, %p131
      %s134 = sadd.s32 %s133, 1
      %p137 = scmp.eq.s32.totalorder %s15, 3
      %p138 = scmp.ne.s32.totalorder %s133, %s135
      %p139 = scmp.eq.s32.totalorder %s15, 0
      %p140 = por %p138, %p139
      %p141 = scmp.ne.s32.totalorder %s133, %s135
      %p142 = scmp.eq.s32.totalorder %s20, 3
      %p143 = por %p141, %p142
      %p144 = scmp.ne.s32.totalorder %s135, %s136
      %p145 = scmp.eq.s32.totalorder %s20, 0
      %p146 = por %p144, %p145
      %p147 = scmp.ne.s32.totalorder %s135, %s136
      %p148 = scmp.eq.s32.totalorder %s21, 3
      %p149 = por %p147, %p148
      %p151 = scmp.ne.s32.totalorder %s136, %s150
      %p152 = scmp.eq.s32.totalorder %s21, 0
      %p153 = por %p151, %p152
      %s155 = sadd.s32 %s154, 1
      %p158 = scmp.eq.s32.totalorder %s15, 3
      %p159 = scmp.ne.s32.totalorder %s154, %s156
      %p160 = scmp.eq.s32.totalorder %s15, 0
      %p161 = por %p159, %p160
      %p162 = scmp.ne.s32.totalorder %s154, %s156
      %p163 = scmp.eq.s32.totalorder %s20, 3
      %p164 = por %p162, %p163
      %p165 = scmp.ne.s32.totalorder %s156, %s157
      %p166 = scmp.eq.s32.totalorder %s20, 0
      %p167 = por %p165, %p166
      %p168 = scmp.ne.s32.totalorder %s156, %s157
      %p169 = scmp.eq.s32.totalorder %s21, 3
      %p170 = por %p168, %p169
      %p172 = scmp.ne.s32.totalorder %s157, %s171
      %p173 = scmp.eq.s32.totalorder %s21, 0
      %p174 = por %p172, %p173
      %s175 = ssub.s32 %s15, %s22
      %p176 = scmp.eq.s32.totalorder %s175, 0
      %s178 = sadd.s32 %s177, 1
      %s179 = scalar_select %p176, %s177, %s178
      %p182 = pneg %p176
      %p183 = scmp.eq.s32.totalorder %s15, 3
      %p184 = por %p182, %p183
      %p185 = scmp.ne.s32.totalorder %s177, %s180
      %p186 = scmp.eq.s32.totalorder %s15, 0
      %p187 = por %p185, %p186
      %p188 = scmp.ne.s32.totalorder %s177, %s180
      %p189 = scmp.eq.s32.totalorder %s20, 3
      %p190 = por %p188, %p189
      %p191 = scmp.ne.s32.totalorder %s180, %s181
      %p192 = scmp.eq.s32.totalorder %s20, 0
      %p193 = por %p191, %p192
      %p194 = scmp.ne.s32.totalorder %s180, %s181
      %p195 = scmp.eq.s32.totalorder %s21, 3
      %p196 = por %p194, %p195
      %p198 = scmp.ne.s32.totalorder %s181, %s197
      %p199 = scmp.eq.s32.totalorder %s21, 0
      %p200 = por %p198, %p199
      %p201 = scmp.le.s32.totalorder 1, %s15
      %p202 = scmp.lt.s32.totalorder %s15, 5
      %p203 = pnand %p201, %p202
      %p204 = pneg %p203
      // Predicated region
      $region9: #{tpu_custom_call.1} parent=5 // pred_check
        _
      $region10: #{tpu_custom_call.1} parent=5 // pred_check_branch
        %206 = sbr.rel (%p203) target = $region12
      $region11: #{tpu_custom_call.1} parent=5 // pred_region
        %s207 = ssub.s32 %s15, 1
        // Predicated region
        $region13: #{tpu_custom_call.1} parent=11 // pred_check
          %p208 = pneg %p62
        $region14: #{tpu_custom_call.1} parent=11 // pred_check_branch
          %210 = sbr.rel (%p208) target = $region16
        $region15: #{tpu_custom_call.1} parent=11 // pred_region
          %s212 = ssub.s32 256, 256
          %213 = vsyncadd [#allocation3], %s212
          %s214 = sshll.u32 [#allocation2], 4
          %s215 = int_to_ptr.vmem [resolvable:$true] %s214
          %220 = dma.hbm_to_vmem [thread:$0]  %s1, 256, %s215, [#allocation3], 64, 64, 4
        $region16: #{tpu_custom_call.1} parent=11 // pred_fallthru
          _
        // Predicated region
        $region17: #{tpu_custom_call.1} parent=11 // pred_check
          %p221 = pneg %p83
        $region18: #{tpu_custom_call.1} parent=11 // pred_check_branch
          %223 = sbr.rel (%p221) target = $region20
        $region19: #{tpu_custom_call.1} parent=11 // pred_region
          _
        $region20: #{tpu_custom_call.1} parent=11 // pred_fallthru
          _
        // Predicated region
        $region21: #{tpu_custom_call.1} parent=11 // pred_check
          %p224 = pneg %p104
        $region22: #{tpu_custom_call.1} parent=11 // pred_check_branch
          %226 = sbr.rel (%p224) target = $region24
        $region23: #{tpu_custom_call.1} parent=11 // pred_region
          %s228 = ssub.s32 512, 512
          %229 = vsyncadd [#allocation5], %s228
          %s230 = sshll.u32 [#allocation4], 4
          %s231 = int_to_ptr.vmem [resolvable:$true] %s230
          %236 = dma.hbm_to_vmem [thread:$0]  %s3, 512, %s231, [#allocation5], 64, 64, 4
        $region24: #{tpu_custom_call.1} parent=11 // pred_fallthru
          _
        // Predicated region
        $region25: #{tpu_custom_call.1} parent=11 // pred_check
          %p237 = pneg %p125
        $region26: #{tpu_custom_call.1} parent=11 // pred_check_branch
          %239 = sbr.rel (%p237) target = $region28
        $region27: #{tpu_custom_call.1} parent=11 // pred_region
          _
        $region28: #{tpu_custom_call.1} parent=11 // pred_fallthru
          _
        // Predicated region
        $region29: #{tpu_custom_call.1} parent=11 // pred_check
          %p240 = pneg %p146
        $region30: #{tpu_custom_call.1} parent=11 // pred_check_branch
          %242 = sbr.rel (%p240) target = $region32
        $region31: #{tpu_custom_call.1} parent=11 // pred_region
          _
        $region32: #{tpu_custom_call.1} parent=11 // pred_fallthru
          _
        // Predicated region
        $region33: #{tpu_custom_call.1} parent=11 // pred_check
          %p243 = pneg %p167
        $region34: #{tpu_custom_call.1} parent=11 // pred_check_branch
          %245 = sbr.rel (%p243) target = $region36
        $region35: #{tpu_custom_call.1} parent=11 // pred_region
          _
        $region36: #{tpu_custom_call.1} parent=11 // pred_fallthru
          _
      $region12: #{tpu_custom_call.1} parent=5 // pred_fallthru
        _
      %p246 = scmp.lt.s32.totalorder %s15, 4
      // Predicated region
      $region37: #{tpu_custom_call.1} parent=5 // pred_check
        %p247 = pneg %p246
      $region38: #{tpu_custom_call.1} parent=5 // pred_check_branch
        %249 = sbr.rel (%p247) target = $region40
      $region39: #{tpu_custom_call.1} parent=5 // pred_region
        // Predicated region
        $region41: #{tpu_custom_call.1} parent=39 // pred_check
          %p250 = pneg %p35
        $region42: #{tpu_custom_call.1} parent=39 // pred_check_branch
          %252 = sbr.rel (%p250) target = $region44
        $region43: #{tpu_custom_call.1} parent=39 // pred_region
          %p253 = scmp.lt.s32.totalorder %s15, 3
          %s254 = scalar_select %p253, %s15, 3
          %s255 = smul.addr %s254, 8
          %s256 = scalar_lea.vmem %s0, %s255
        $region44: #{tpu_custom_call.1} parent=39 // pred_fallthru
          _
      $region40: #{tpu_custom_call.1} parent=5 // pred_fallthru
        _
      %p257 = scmp.le.s32.totalorder 1, %s15
      %p258 = scmp.lt.s32.totalorder %s15, 5
      %p259 = pnand %p257, %p258
      %p260 = pneg %p259
      // Predicated region
      $region45: #{tpu_custom_call.1} parent=5 // pred_check
        _
      $region46: #{tpu_custom_call.1} parent=5 // pred_check_branch
        %262 = sbr.rel (%p259) target = $region48
      $region47: #{tpu_custom_call.1} parent=5 // pred_region
        %s263 = ssub.s32 %s15, 1
        // Predicated region
        $region49: #{tpu_custom_call.1} parent=47 // pred_check
          %p264 = pneg %p62
        $region50: #{tpu_custom_call.1} parent=47 // pred_check_branch
          %266 = sbr.rel (%p264) target = $region52
        $region51: #{tpu_custom_call.1} parent=47 // pred_region
          %267 = dma.done [#allocation3], 256
        $region52: #{tpu_custom_call.1} parent=47 // pred_fallthru
          _
        // Predicated region
        $region53: #{tpu_custom_call.1} parent=47 // pred_check
          %p268 = pneg %p104
        $region54: #{tpu_custom_call.1} parent=47 // pred_check_branch
          %270 = sbr.rel (%p268) target = $region56
        $region55: #{tpu_custom_call.1} parent=47 // pred_region
          %271 = dma.done [#allocation5], 512
        $region56: #{tpu_custom_call.1} parent=47 // pred_fallthru
          _
        %p272 = scmp.lt.s32.totalorder %s20, 3
        %s273 = scalar_select %p272, %s20, 3
        %s274 = smul.addr %s273, 8
        %s275 = scalar_lea.vmem %s0, %s274
        %p276 = pneg %p41
        %p277 = pneg %p38
        %p278 = pneg %p62
        %p279 = pneg %p59
        %p280 = pneg %p83
        %p281 = pneg %p80
        %p282 = pneg %p104
        %p283 = pneg %p101
        %p284 = pneg %p125
        %p285 = pneg %p122
        %p286 = pneg %p146
        %p287 = pneg %p143
        %p288 = pneg %p167
        %p289 = pneg %p164
        %p290 = pneg %p193
        %p291 = pneg %p190
        %p292 = scmp.lt.s32.totalorder %s20, 3
        %s293 = scalar_select %p292, %s20, 3
        %s294 = smul.addr %s293, 8
        %s295 = scalar_lea.vmem %s7, %s294
        %p296 = scmp.lt.s32.totalorder %s20, 3
        %s297 = scalar_select %p296, %s20, 3
        %s298 = smul.addr %s297, 8
        %s299 = scalar_lea.vmem %s0, %s298
        %p300 = scmp.lt.s32.totalorder %s20, 3
        %s301 = scalar_select %p300, %s20, 3
        %s302 = smul.addr %s301, 8
        %s303 = scalar_lea.vmem %s7, %s302
        %v305 = vld [vmem:[%s299] sm:$0xff]
        %v306 = vpack.c.bf16 %v305, %v305
        %v307 = vld [vmem:[#allocation2] sm:$0xf]
        %v308 = vld [vmem:[#allocation2 + $0x4] sm:$0xf]
        %v309 = vld [vmem:[#allocation2 + $0x8] sm:$0xf]
        %v310 = vld [vmem:[#allocation2 + $0xc] sm:$0xf]
        %v311 = vld [vmem:[%s2] sm:$0x1]
        %v313 = vlaneseq
        %v314 = vshrl.u32 %v313, 7
        %v315 = vsub.s32 0, %v314
        %v316 = vrot.slane %v311, %v315
        %v322 = vunpack.c.l.b16 %v307
        %v323 = vunpack.c.l.b16 %v308
        %v324 = vunpack.c.l.b16 %v309
        %v325 = vunpack.c.l.b16 %v310
        %v326 = vpack.c.b16 %v323, %v322
        %v327 = vpack.c.b16 %v325, %v324
        %vm330 = vcmask 261120
        %v332 = vsel %vm330, %v306, 0
        %334 = vmatprep.subr.bf16.mxu0 0
        %335 = vmatpush1.bf16.msra.mxu0 0
        %336 = vmatprep.subr.bf16.mxu0 0
        %337 = vmatpush1.bf16.msra.mxu0 0
        %338 = vmatprep.subr.bf16.mxu0 0
        %339 = vmatpush1.bf16.msra.mxu0 0
        %340 = vmatprep.subr.bf16.mxu0 0
        %341 = vmatpush1.bf16.msra.mxu0 0
        %342 = vmatprep.subr.bf16.mxu0 0
        %343 = vmatpush1.bf16.msra.mxu0 0
        %344 = vmatprep.subr.bf16.mxu0 0
        %345 = vmatpush1.bf16.msra.mxu0 0
        %346 = vmatprep.subr.bf16.mxu0 0
        %347 = vmatpush1.bf16.msra.mxu0 %v327
        %348 = vmatprep.subr.bf16.mxu0 0
        %349 = vmatpush1.bf16.msra.mxu0 %v326
        %350 = vmatprep.subr.bf16.mxu0 0
        %351 = vmatpush2.bf16.msra.mxu0 0
        %352 = vmatprep.subr.bf16.mxu0 0
        %353 = vmatpush2.bf16.msra.mxu0 0
        %354 = vmatprep.subr.bf16.mxu0 0
        %355 = vmatpush2.bf16.msra.mxu0 0
        %356 = vmatprep.subr.bf16.mxu0 0
        %357 = vmatpush2.bf16.msra.mxu0 0
        %358 = vmatprep.subr.bf16.mxu0 0
        %359 = vmatpush2.bf16.msra.mxu0 0
        %360 = vmatprep.subr.bf16.mxu0 0
        %361 = vmatpush2.bf16.msra.mxu0 0
        %362 = vmatprep.subr.bf16.mxu0 0
        %363 = vmatpush2.bf16.msra.mxu0 0
        %364 = vmatprep.subr.bf16.mxu0 0
        %365 = vmatpush2.bf16.msra.mxu0 0
        %366 = vmatprep.mubr.bf16.mxu0 0
        %367 = vmatmul.mubr.bf16.gmra.mxu0 %v332
        %v368 = vpop.f32.mrf.mxu0
        %v369 = vadd.f32 %v316, %v368
        %v370 = vpop.f32.mrf.mxu0
        %v371 = vpop.f32.mrf.mxu0
        %v372 = vpop.f32.mrf.mxu0
        %373 = vdwg.mxu0
        %v374 = vmax.f32 %v369, 0.0
        %v375 = vpack.c.bf16 %v374, %v374
        %v376 = vld [vmem:[#allocation4] sm:$0xf]
        %v377 = vld [vmem:[#allocation4 + $0x4] sm:$0xf]
        %v378 = vld [vmem:[#allocation4 + $0x8] sm:$0xf]
        %v379 = vld [vmem:[#allocation4 + $0xc] sm:$0xf]
        %v380 = vld [vmem:[#allocation4 + $0x10] sm:$0xf]
        %v381 = vld [vmem:[#allocation4 + $0x14] sm:$0xf]
        %v382 = vld [vmem:[#allocation4 + $0x18] sm:$0xf]
        %v383 = vld [vmem:[#allocation4 + $0x1c] sm:$0xf]
        %v384 = vld [vmem:[%s4] sm:$0x1]
        %v386 = vlaneseq
        %v387 = vshrl.u32 %v386, 7
        %v388 = vsub.s32 0, %v387
        %v389 = vrot.slane %v384, %v388
        %v399 = vunpack.c.l.b16 %v376
        %v400 = vunpack.c.l.b16 %v377
        %v401 = vunpack.c.l.b16 %v378
        %v402 = vunpack.c.l.b16 %v379
        %v403 = vunpack.c.l.b16 %v380
        %v404 = vunpack.c.l.b16 %v381
        %v405 = vunpack.c.l.b16 %v382
        %v406 = vunpack.c.l.b16 %v383
        %v407 = vpack.c.b16 %v400, %v399
        %v408 = vpack.c.b16 %v402, %v401
        %v409 = vpack.c.b16 %v404, %v403
        %v410 = vpack.c.b16 %v406, %v405
        %vm415 = vcmask 523264
        %v417 = vsel %vm415, %v375, 0
        %419 = vmatprep.subr.bf16.mxu0 0
        %420 = vmatpush1.bf16.msra.mxu0 0
        %421 = vmatprep.subr.bf16.mxu0 0
        %422 = vmatpush1.bf16.msra.mxu0 0
        %423 = vmatprep.subr.bf16.mxu0 0
        %424 = vmatpush1.bf16.msra.mxu0 0
        %425 = vmatprep.subr.bf16.mxu0 0
        %426 = vmatpush1.bf16.msra.mxu0 0
        %427 = vmatprep.subr.bf16.mxu0 0
        %428 = vmatpush1.bf16.msra.mxu0 %v410
        %429 = vmatprep.subr.bf16.mxu0 0
        %430 = vmatpush1.bf16.msra.mxu0 %v409
        %431 = vmatprep.subr.bf16.mxu0 0
        %432 = vmatpush1.bf16.msra.mxu0 %v408
        %433 = vmatprep.subr.bf16.mxu0 0
        %434 = vmatpush1.bf16.msra.mxu0 %v407
        %435 = vmatprep.subr.bf16.mxu0 0
        %436 = vmatpush2.bf16.msra.mxu0 0
        %437 = vmatprep.subr.bf16.mxu0 0
        %438 = vmatpush2.bf16.msra.mxu0 0
        %439 = vmatprep.subr.bf16.mxu0 0
        %440 = vmatpush2.bf16.msra.mxu0 0
        %441 = vmatprep.subr.bf16.mxu0 0
        %442 = vmatpush2.bf16.msra.mxu0 0
        %443 = vmatprep.subr.bf16.mxu0 0
        %444 = vmatpush2.bf16.msra.mxu0 0
        %445 = vmatprep.subr.bf16.mxu0 0
        %446 = vmatpush2.bf16.msra.mxu0 0
        %447 = vmatprep.subr.bf16.mxu0 0
        %448 = vmatpush2.bf16.msra.mxu0 0
        %449 = vmatprep.subr.bf16.mxu0 0
        %450 = vmatpush2.bf16.msra.mxu0 0
        %451 = vmatprep.mubr.bf16.mxu0 0
        %452 = vmatmul.mubr.bf16.gmra.mxu0 %v417
        %v453 = vpop.f32.mrf.mxu0
        %v454 = vadd.f32 %v389, %v453
        %v455 = vpop.f32.mrf.mxu0
        %v456 = vpop.f32.mrf.mxu0
        %v457 = vpop.f32.mrf.mxu0
        %458 = vdwg.mxu0
        %v459 = vmax.f32 %v454, 0.0
        %v460 = vpack.c.bf16 %v459, %v459
        %v461 = vld [vmem:[%s5] sm:$0xf]
        %v462 = vld [vmem:[%s5 + $0x4] sm:$0xf]
        %v463 = vld [vmem:[%s5 + $0x8] sm:$0xf]
        %v464 = vld [vmem:[%s5 + $0xc] sm:$0xf]
        %v465 = vld [vmem:[%s5 + $0x10] sm:$0xf]
        %v466 = vld [vmem:[%s5 + $0x14] sm:$0xf]
        %v467 = vld [vmem:[%s5 + $0x18] sm:$0xf]
        %v468 = vld [vmem:[%s5 + $0x1c] sm:$0xf]
        %v469 = vld [vmem:[%s6] sm:$0x1]
        %v471 = vlaneseq
        %v472 = vshrl.u32 %v471, 7
        %v473 = vsub.s32 0, %v472
        %v474 = vrot.slane %v469, %v473
        %v484 = vunpack.c.l.b16 %v461
        %v485 = vunpack.c.l.b16 %v462
        %v486 = vunpack.c.l.b16 %v463
        %v487 = vunpack.c.l.b16 %v464
        %v488 = vunpack.c.l.b16 %v465
        %v489 = vunpack.c.l.b16 %v466
        %v490 = vunpack.c.l.b16 %v467
        %v491 = vunpack.c.l.b16 %v468
        %v492 = vpack.c.b16 %v485, %v484
        %v493 = vpack.c.b16 %v487, %v486
        %v494 = vpack.c.b16 %v489, %v488
        %v495 = vpack.c.b16 %v491, %v490
        %v501 = vsel %vm415, %v460, 0
        %503 = vmatprep.subr.bf16.mxu0 0
        %504 = vmatpush1.bf16.msra.mxu0 0
        %505 = vmatprep.subr.bf16.mxu0 0
        %506 = vmatpush1.bf16.msra.mxu0 0
        %507 = vmatprep.subr.bf16.mxu0 0
        %508 = vmatpush1.bf16.msra.mxu0 0
        %509 = vmatprep.subr.bf16.mxu0 0
        %510 = vmatpush1.bf16.msra.mxu0 0
        %511 = vmatprep.subr.bf16.mxu0 0
        %512 = vmatpush1.bf16.msra.mxu0 %v495
        %513 = vmatprep.subr.bf16.mxu0 0
        %514 = vmatpush1.bf16.msra.mxu0 %v494
        %515 = vmatprep.subr.bf16.mxu0 0
        %516 = vmatpush1.bf16.msra.mxu0 %v493
        %517 = vmatprep.subr.bf16.mxu0 0
        %518 = vmatpush1.bf16.msra.mxu0 %v492
        %519 = vmatprep.subr.bf16.mxu0 0
        %520 = vmatpush2.bf16.msra.mxu0 0
        %521 = vmatprep.subr.bf16.mxu0 0
        %522 = vmatpush2.bf16.msra.mxu0 0
        %523 = vmatprep.subr.bf16.mxu0 0
        %524 = vmatpush2.bf16.msra.mxu0 0
        %525 = vmatprep.subr.bf16.mxu0 0
        %526 = vmatpush2.bf16.msra.mxu0 0
        %527 = vmatprep.subr.bf16.mxu0 0
        %528 = vmatpush2.bf16.msra.mxu0 0
        %529 = vmatprep.subr.bf16.mxu0 0
        %530 = vmatpush2.bf16.msra.mxu0 0
        %531 = vmatprep.subr.bf16.mxu0 0
        %532 = vmatpush2.bf16.msra.mxu0 0
        %533 = vmatprep.subr.bf16.mxu0 0
        %534 = vmatpush2.bf16.msra.mxu0 0
        %535 = vmatprep.mubr.bf16.mxu0 0
        %536 = vmatmul.mubr.bf16.gmra.mxu0 %v501
        %v537 = vpop.f32.mrf.mxu0
        %v538 = vadd.f32 %v474, %v537
        %v539 = vpop.f32.mrf.mxu0
        %v540 = vpop.f32.mrf.mxu0
        %v541 = vpop.f32.mrf.mxu0
        %542 = vdwg.mxu0
        %vm543 = vcmask 130048
        %v544 = vsel %vm543, %v538, -inf
        %545 = vmax.xlane.f32.xlu0 %v544
        %v546 = vpop.xlane.xlu0 %545
        %v547 = vsub.f32 %v538, %v546
        %v548 = vmul.f32 %v547, 1.442695
        %v549 = vpow.pop %v548
        %v550 = vsel %vm543, %v549, 0.0
        %551 = vadd.xlane.f32.xlu0 %v550
        %v552 = vpop.xlane.xlu0 %551
        %v553 = vlog2.pop %v552
        %v554 = vmul.f32 %v553, 0.6931472
        %v555 = vsub.f32 %v547, %v554
        %556 = vst.msk [vmem:[%s303] sm:$0xff] %vm543, %v555
        %p557 = scmp.lt.s32.totalorder %s20, 3
        %s558 = scalar_select %p557, %s20, 3
        %s559 = smul.addr %s558, 8
        %s560 = scalar_lea.vmem %s7, %s559
        // Predicated region
        $region57: #{tpu_custom_call.1} parent=47 // pred_check
          %p561 = pneg %p190
        $region58: #{tpu_custom_call.1} parent=47 // pred_check_branch
          %563 = sbr.rel (%p561) target = $region60
        $region59: #{tpu_custom_call.1} parent=47 // pred_region
          _
        $region60: #{tpu_custom_call.1} parent=47 // pred_fallthru
          _
      $region48: #{tpu_custom_call.1} parent=5 // pred_fallthru
        _
      %p564 = scmp.le.s32.totalorder 2, %s15
      // Predicated region
      $region61: #{tpu_custom_call.1} parent=5 // pred_check
        %p565 = pneg %p564
      $region62: #{tpu_custom_call.1} parent=5 // pred_check_branch
        %567 = sbr.rel (%p565) target = $region64
      $region63: #{tpu_custom_call.1} parent=5 // pred_region
        %s568 = ssub.s32 %s15, 2
        // Predicated region
        $region65: #{tpu_custom_call.1} parent=63 // pred_check
          %p569 = pneg %p196
        $region66: #{tpu_custom_call.1} parent=63 // pred_check_branch
          %571 = sbr.rel (%p569) target = $region68
        $region67: #{tpu_custom_call.1} parent=63 // pred_region
          %p572 = scmp.lt.s32.totalorder %s21, 3
          %s573 = scalar_select %p572, %s21, 3
          %s574 = smul.addr %s573, 8
          %s575 = scalar_lea.vmem %s7, %s574
        $region68: #{tpu_custom_call.1} parent=63 // pred_fallthru
          _
      $region64: #{tpu_custom_call.1} parent=5 // pred_fallthru
        _
    $region6: #{tpu_custom_call.1} parent=1 // loop_footer
      %s19 = sadd.s32 1, %s15
    $region7: #{tpu_custom_call.1} parent=1 // loop_footer_branch
      %14 = sbr.rel target = $region3
    $region8: #{tpu_custom_call.1} parent=1 // loop_exit
      _
    %576 = vsyncpa [#allocation3], 1
    %s577 = scalar_lea.sflag [#allocation3], 1
    %578 = vsyncpa %s577, 1
    %579 = vsyncpa [#allocation5], 1

</llo_original>
